<compile_context>
chip_gen: v5e
topology: v5e:2x2
jax: 0.10.0
libtpu: 0.0.40
codegen_flags: <defaults>
</compile_context>

<pallas_src>
import math
import functools

import jax
import jax.numpy as jnp
from jax.experimental import pallas as pl
from jax.experimental.pallas import tpu as pltpu


def _sdpa_kernel(q_ref, k_ref, o_ref, *, inv_temperature):
    # q_ref: (TBH, Lq, D)   k_ref: (TBH, Lk, D)   o_ref: (1, TBH, Lq)
    q = q_ref[...]                                     # (TBH, Lq, D)
    k = k_ref[...]                                     # (TBH, Lk, D)

    # Reduce keys over the Lk axis first (VPU sublane-sum): (TBH, 1, D)
    ksum = jnp.sum(k, axis=1, keepdims=True)

    # Per-row dot of q with the reduced key vector; D lives on lanes so this is
    # an elementwise multiply + lane reduce -> (TBH, Lq).  Scale the reduced
    # logits (Lq values/head), not the full (Lq, D) q tile.
    logits = jnp.sum(q * ksum, axis=-1) * inv_temperature

    # softmax over Lq (dim=-1 of the (B, H, Lq) tensor), per head.
    m = jnp.max(logits, axis=-1, keepdims=True)
    e = jnp.exp(logits - m)
    denom = jnp.sum(e, axis=-1, keepdims=True)
    p = e * pl.reciprocal(denom, approx=True)          # EUP divide (free slot)

    o_ref[0] = p.astype(o_ref.dtype)


def _choose_tbh(BH, Lq, Lk, D, budget_bytes=4 * 1024 * 1024):
    """Largest divisor of BH whose (q + k + out) tile fits the per-stage budget."""
    per_head_bytes = 4 * (Lq * D + Lk * D + Lq)
    max_fit = max(1, budget_bytes // per_head_bytes)
    best = 1
    for t in range(1, BH + 1):
        if BH % t == 0 and t <= max_fit:
            best = t
    return best


def scaled_dot_product_attention(q, k, v, temperature):
    """q, k, v: (B, H, L, D) float32.  Returns (B, H, Lq) float32 (v unused)."""
    del v  # unused by the reference forward
    B, H, Lq, D = q.shape
    Lk = k.shape[2]
    BH = B * H

    q2 = q.reshape(BH, Lq, D)
    k2 = k.reshape(BH, Lk, D)

    tbh = _choose_tbh(BH, Lq, Lk, D)
    grid = BH // tbh

    # Advisory cost: streaming reduction, mem-bound.
    bytes_accessed = 4 * (BH * Lq * D + BH * Lk * D + BH * Lq)
    flops = BH * (2 * Lq * D + Lk * D + 4 * Lq)
    cost = pl.CostEstimate(
        flops=flops, transcendentals=BH * Lq, bytes_accessed=bytes_accessed)

    kernel = functools.partial(
        _sdpa_kernel, inv_temperature=1.0 / float(temperature))

    out = pl.pallas_call(
        kernel,
        out_shape=jax.ShapeDtypeStruct((grid, tbh, Lq), jnp.float32),
        grid_spec=pltpu.PrefetchScalarGridSpec(
            num_scalar_prefetch=0,
            grid=(grid,),
            in_specs=[
                pl.BlockSpec((tbh, Lq, D), lambda i: (i, 0, 0)),
                pl.BlockSpec((tbh, Lk, D), lambda i: (i, 0, 0)),
            ],
            out_specs=pl.BlockSpec((1, tbh, Lq), lambda i: (i, 0, 0)),
        ),
        compiler_params=pltpu.CompilerParams(
            dimension_semantics=("parallel",),   # BH axis -> megacore on v7x
            vmem_limit_bytes=32 * 1024 * 1024,   # safe on v5e/v6e/v7x budgets
        ),
        cost_estimate=cost,
    )(q2, k2)

    return out.reshape(B, H, Lq)


def _reference(q, k, temperature):
    attn = jnp.einsum("bhqd,bhkd->bhqk", q / temperature, k)
    attn = jnp.sum(attn, axis=-1)
    return jax.nn.softmax(attn, axis=-1)


if __name__ == "__main__":
    B, H, L, D = 2, 2, 8, 32
    temperature = math.sqrt(D)

    key = jax.random.PRNGKey(0)
    kq, kk, kv = jax.random.split(key, 3)
    q = jax.random.normal(kq, (B, H, L, D), dtype=jnp.float32)
    k = jax.random.normal(kk, (B, H, L, D), dtype=jnp.float32)
    v = jax.random.normal(kv, (B, H, L, D), dtype=jnp.float32)

    out = scaled_dot_product_attention(q, k, v, temperature)
    out = jax.block_until_ready(out)

    ref = _reference(q, k, temperature)
    assert out.shape == (B, H, L)
    # Tolerance accounts for the EUP approximate reciprocal in the softmax.
    assert jnp.allclose(out, ref, atol=2e-3, rtol=2e-3)

    print("KERNEL_OK")
</pallas_src>

<mosaic_0001>
module attributes {stable_mosaic.version = 11 : i64} {
  func.func @_sdpa_kernel(%arg0: i32, %arg1: memref<4x8x32xf32, #tpu.memory_space<vmem>>, %arg2: memref<4x8x32xf32, #tpu.memory_space<vmem>>, %arg3: memref<1x4x8xf32, #tpu.memory_space<vmem>>) attributes {dimension_semantics = [#tpu.dimension_semantics<parallel>], iteration_bounds = array<i64: 1>, scalar_prefetch = 0 : i64, scratch_operands = 0 : i64, tpu.core_type = #tpu.core_type<tc>, window_params = [{transform_indices = @transform_0, window_bounds = array<i64: 4, 8, 32>}, {transform_indices = @transform_1, window_bounds = array<i64: 4, 8, 32>}, {transform_indices = @transform_2, window_bounds = array<i64: 1, 4, 8>}]} {
    %c0 = arith.constant 0 : index
    %c0_0 = arith.constant 0 : index
    %c0_1 = arith.constant 0 : index
    %0 = vector.load %arg1[%c0, %c0_0, %c0_1] : memref<4x8x32xf32, #tpu.memory_space<vmem>>, vector<4x8x32xf32>
    %c0_2 = arith.constant 0 : index
    %c0_3 = arith.constant 0 : index
    %c0_4 = arith.constant 0 : index
    %1 = vector.load %arg2[%c0_2, %c0_3, %c0_4] : memref<4x8x32xf32, #tpu.memory_space<vmem>>, vector<4x8x32xf32>
    %cst = arith.constant dense<0.000000e+00> : vector<4x32xf32>
    %2 = vector.multi_reduction <add>, %1, %cst [1] : vector<4x8x32xf32> to vector<4x32xf32>
    %3 = vector.shape_cast %2 : vector<4x32xf32> to vector<4x1x32xf32>
    %4 = vector.broadcast %3 : vector<4x1x32xf32> to vector<4x8x32xf32>
    %5 = arith.mulf %0, %4 : vector<4x8x32xf32>
    %cst_5 = arith.constant dense<0.000000e+00> : vector<4x8xf32>
    %6 = vector.multi_reduction <add>, %5, %cst_5 [2] : vector<4x8x32xf32> to vector<4x8xf32>
    %cst_6 = arith.constant 0.176776692 : f32
    %7 = vector.broadcast %cst_6 : f32 to vector<4x8xf32>
    %8 = arith.mulf %6, %7 : vector<4x8xf32>
    %cst_7 = arith.constant dense<0xFF800000> : vector<4xf32>
    %9 = vector.multi_reduction <maximumf>, %8, %cst_7 [1] : vector<4x8xf32> to vector<4xf32>
    %10 = vector.shape_cast %9 : vector<4xf32> to vector<4x1xf32>
    %11 = vector.broadcast %10 : vector<4x1xf32> to vector<4x8xf32>
    %12 = arith.subf %8, %11 : vector<4x8xf32>
    %13 = math.exp %12 : vector<4x8xf32>
    %cst_8 = arith.constant dense<0.000000e+00> : vector<4xf32>
    %14 = vector.multi_reduction <add>, %13, %cst_8 [1] : vector<4x8xf32> to vector<4xf32>
    %15 = vector.shape_cast %14 : vector<4xf32> to vector<4x1xf32>
    %16 = tpu.reciprocal %15 {approx = true} : vector<4x1xf32> -> vector<4x1xf32>
    %17 = vector.broadcast %16 : vector<4x1xf32> to vector<4x8xf32>
    %18 = arith.mulf %13, %17 : vector<4x8xf32>
    %c0_9 = arith.constant 0 : index
    %c0_10 = arith.constant 0 : index
    %c0_11 = arith.constant 0 : index
    %19 = vector.load %arg3[%c0_9, %c0_10, %c0_11] : memref<1x4x8xf32, #tpu.memory_space<vmem>>, vector<1x4x8xf32>
    %20 = vector.shape_cast %19 : vector<1x4x8xf32> to vector<4x8xf32>
    %21 = vector.shape_cast %18 : vector<4x8xf32> to vector<1x4x8xf32>
    tpu.vector_store %arg3[%c0_9, %c0_10, %c0_11], %21 {strides = array<i32>} : memref<1x4x8xf32, #tpu.memory_space<vmem>>, vector<1x4x8xf32>,
    return
  }
  func.func @transform_0(%arg0: i32) -> (i32, i32, i32) {
    %c0_i32 = arith.constant 0 : i32
    %c0_i32_0 = arith.constant 0 : i32
    %c0_i32_1 = arith.constant 0 : i32
    return %arg0, %c0_i32, %c0_i32_0 : i32, i32, i32
  }
  func.func @transform_1(%arg0: i32) -> (i32, i32, i32) {
    %c0_i32 = arith.constant 0 : i32
    %c0_i32_0 = arith.constant 0 : i32
    %c0_i32_1 = arith.constant 0 : i32
    return %arg0, %c0_i32, %c0_i32_0 : i32, i32, i32
  }
  func.func @transform_2(%arg0: i32) -> (i32, i32, i32) {
    %c0_i32 = arith.constant 0 : i32
    %c0_i32_0 = arith.constant 0 : i32
    %c0_i32_1 = arith.constant 0 : i32
    return %arg0, %c0_i32, %c0_i32_0 : i32, i32, i32
  }
}

</mosaic_0001>

<llo_original>
// kernel: tpu_custom_call.1
$region0: #{tpu_custom_call.1}
  #allocation0 [shape = 'u32[]', space=smem, size = 0x4, offset = 0x4, fixed_abs, tag = 'smem constant byte address 0x4 - core index']
  #allocation1 [shape = 'u32[72,128]{1,0:T(1,128)}', space=vmem, size = 0x9000, scoped, tag = 'internal scratch']
  %s0 = inlined_call_operand.hbm [shape: f32[4,8,32], index: 0, kind: input, shape index: {}]
  %s1 = inlined_call_operand.hbm [shape: f32[4,8,32], index: 1, kind: input, shape index: {}]
  %s2 = inlined_call_operand.hbm [shape: f32[1,4,8], index: 2, kind: output, shape index: {}]
  %s3 = sld [smem:[#allocation0]]
  $region26: #{tpu_custom_call.1} parent=0
    _
  %s5 = ssub.s32 1, %s3
  %s6 = scalar_select 0, %s5, %s3
  $region1: #{tpu_custom_call.1} parent=0
    #allocation2 [shape = 'u8[16384]{0}', space=vmem, size = 0x4000, scoped, tag = 'input window, operand 0, single buffered']
    #allocation3 [shape = 's32[1]{0}', space=sflag, size = 0x4, scoped, tag = 'scoped memory for tpu_custom_call.1']
    #allocation4 [shape = 's32[1]{0}', space=sflag, size = 0x4, scoped, tag = 'scoped memory for tpu_custom_call.1']
    #allocation5 [shape = 'u8[16384]{0}', space=vmem, size = 0x4000, scoped, tag = 'input window, operand 1, single buffered']
    #allocation6 [shape = 's32[1]{0}', space=sflag, size = 0x4, scoped, tag = 'scoped memory for tpu_custom_call.1']
    #allocation7 [shape = 'u8[2048]{0}', space=vmem, size = 0x800, scoped, tag = 'output window, operand 0, single buffered']
    %7 = vsyncpa [#allocation3], 0
    %8 = vsyncpa [#allocation6], 0
    %9 = vsyncpa [#allocation4], 0
    // Predicated region
    $region2: #{tpu_custom_call.1} parent=1 // pred_check
      _
    $region3: #{tpu_custom_call.1} parent=1 // pred_check_branch
      %11 = sbr.rel (0) target = $region5
    $region4: #{tpu_custom_call.1} parent=1 // pred_region
      %13 = vsyncadd [#allocation3], 0
      %s14 = sshll.u32 %s0, 4
      %s15 = int_to_ptr.hbm [resolvable:$true] %s14
      %s16 = sshll.u32 [#allocation2], 4
      %s17 = int_to_ptr.vmem [resolvable:$true] %s16
      %22 = dma.hbm_to_vmem [thread:$0]  %s15, 512, %s17, [#allocation3], 128, 128, 8
    $region5: #{tpu_custom_call.1} parent=1 // pred_fallthru
      _
    // Predicated region
    $region6: #{tpu_custom_call.1} parent=1 // pred_check
      _
    $region7: #{tpu_custom_call.1} parent=1 // pred_check_branch
      %24 = sbr.rel (0) target = $region9
    $region8: #{tpu_custom_call.1} parent=1 // pred_region
      %26 = vsyncadd [#allocation6], 0
      %s27 = sshll.u32 %s1, 4
      %s28 = int_to_ptr.hbm [resolvable:$true] %s27
      %s29 = sshll.u32 [#allocation5], 4
      %s30 = int_to_ptr.vmem [resolvable:$true] %s29
      %35 = dma.hbm_to_vmem [thread:$0]  %s28, 512, %s30, [#allocation6], 128, 128, 8
    $region9: #{tpu_custom_call.1} parent=1 // pred_fallthru
      _
    // Predicated region
    $region10: #{tpu_custom_call.1} parent=1 // pred_check
      _
    $region11: #{tpu_custom_call.1} parent=1 // pred_check_branch
      %37 = sbr.rel (0) target = $region13
    $region12: #{tpu_custom_call.1} parent=1 // pred_region
      %39 = dma.done [#allocation3], 512
    $region13: #{tpu_custom_call.1} parent=1 // pred_fallthru
      _
    // Predicated region
    $region14: #{tpu_custom_call.1} parent=1 // pred_check
      _
    $region15: #{tpu_custom_call.1} parent=1 // pred_check_branch
      %41 = sbr.rel (0) target = $region17
    $region16: #{tpu_custom_call.1} parent=1 // pred_region
      %43 = dma.done [#allocation6], 512
    $region17: #{tpu_custom_call.1} parent=1 // pred_fallthru
      _
    %v44 = vld [vmem:[#allocation2] sm:$0xff]
    %v45 = vld [vmem:[#allocation2 + $0x8] sm:$0xff]
    %v46 = vld [vmem:[#allocation2 + $0x10] sm:$0xff]
    %v47 = vld [vmem:[#allocation2 + $0x18] sm:$0xff]
    %v48 = vld [vmem:[#allocation5] sm:$0xff]
    %v49 = vld [vmem:[#allocation5 + $0x8] sm:$0xff]
    %v50 = vld [vmem:[#allocation5 + $0x10] sm:$0xff]
    %v51 = vld [vmem:[#allocation5 + $0x18] sm:$0xff]
    %vm52 = vcmask 261120
    %v53 = vsel %vm52, %v48, 0.0
    %v54 = vrot.slane %v53, 4
    %v55 = vadd.f32 %v53, %v54
    %v56 = vrot.slane %v55, 2
    %v57 = vadd.f32 %v55, %v56
    %v58 = vrot.slane %v57, 1
    %v59 = vadd.f32 %v57, %v58
    %v60 = vsel %vm52, %v49, 0.0
    %v61 = vrot.slane %v60, 4
    %v62 = vadd.f32 %v60, %v61
    %v63 = vrot.slane %v62, 2
    %v64 = vadd.f32 %v62, %v63
    %v65 = vrot.slane %v64, 1
    %v66 = vadd.f32 %v64, %v65
    %v67 = vsel %vm52, %v50, 0.0
    %v68 = vrot.slane %v67, 4
    %v69 = vadd.f32 %v67, %v68
    %v70 = vrot.slane %v69, 2
    %v71 = vadd.f32 %v69, %v70
    %v72 = vrot.slane %v71, 1
    %v73 = vadd.f32 %v71, %v72
    %v74 = vsel %vm52, %v51, 0.0
    %v75 = vrot.slane %v74, 4
    %v76 = vadd.f32 %v74, %v75
    %v77 = vrot.slane %v76, 2
    %v78 = vadd.f32 %v76, %v77
    %v79 = vrot.slane %v78, 1
    %v80 = vadd.f32 %v78, %v79
    %v81 = vmul.f32 %v44, %v59
    %v82 = vmul.f32 %v45, %v66
    %v83 = vmul.f32 %v46, %v73
    %v84 = vmul.f32 %v47, %v80
    %v85 = vsel %vm52, %v81, 0.0
    %86 = vadd.xlane.f32.xlu0 %v85
    %v87 = vpop.xlane.xlu0 %86
    %v88 = vsel %vm52, %v82, 0.0
    %89 = vadd.xlane.f32.xlu0 %v88
    %v90 = vpop.xlane.xlu0 %89
    %v91 = vsel %vm52, %v83, 0.0
    %92 = vadd.xlane.f32.xlu0 %v91
    %v93 = vpop.xlane.xlu0 %92
    %v94 = vsel %vm52, %v84, 0.0
    %95 = vadd.xlane.f32.xlu0 %v94
    %v96 = vpop.xlane.xlu0 %95
    %v97 = vmul.f32 %v87, 0.17677669
    %v98 = vmul.f32 %v90, 0.17677669
    %v99 = vmul.f32 %v93, 0.17677669
    %v100 = vmul.f32 %v96, 0.17677669
    %v105 = vlaneseq
    %v106 = vand.u32 %v105, 127
    %v107 = vperm.slane %v97, %v106
    %v108 = vperm.slane %v98, %v106
    %v109 = vperm.slane %v99, %v106
    %v110 = vperm.slane %v100, %v106
    %vm111 = vcmask 1041409
    %v112 = vsel %vm111, %v108, %v107
    %vm113 = vcmask 1042434
    %v114 = vsel %vm113, %v109, %v112
    %vm115 = vcmask 1043459
    %v116 = vsel %vm115, %v110, %v114
    %vm118 = vcmask 60416
    %v119 = vsel %vm118, %v116, -inf
    %120 = vmax.xlane.f32.xlu0 %v119
    %v121 = vpop.xlane.xlu0 %120
    %v123 = vperm.slane %v121, 0
    %v124 = vperm.slane %v121, 1
    %v125 = vperm.slane %v121, 2
    %v126 = vperm.slane %v121, 3
    %v131 = vsub.f32 %v97, %v123
    %v132 = vsub.f32 %v98, %v124
    %v133 = vsub.f32 %v99, %v125
    %v134 = vsub.f32 %v100, %v126
    %v135 = vmul.f32 %v131, 1.442695
    %v136 = vpow.pop %v135
    %v137 = vmul.f32 %v132, 1.442695
    %v138 = vpow.pop %v137
    %v139 = vmul.f32 %v133, 1.442695
    %v140 = vpow.pop %v139
    %v141 = vmul.f32 %v134, 1.442695
    %v142 = vpow.pop %v141
    %147 = vset.pattern.permute.xlu0 0
    %148 = vperm.xlu0 %147, %v136
    %v149 = vpop.permute.xlu0 %148
    %150 = vset.pattern.permute.xlu0 0
    %151 = vperm.xlu0 %150, %v138
    %v152 = vpop.permute.xlu0 %151
    %153 = vset.pattern.permute.xlu0 0
    %154 = vperm.xlu0 %153, %v140
    %v155 = vpop.permute.xlu0 %154
    %156 = vset.pattern.permute.xlu0 0
    %157 = vperm.xlu0 %156, %v142
    %v158 = vpop.permute.xlu0 %157
    %v159 = vperm.slane %v149, %v106
    %v160 = vperm.slane %v152, %v106
    %v161 = vperm.slane %v155, %v106
    %v162 = vperm.slane %v158, %v106
    %v163 = vsel %vm111, %v160, %v159
    %v164 = vsel %vm113, %v161, %v163
    %v165 = vsel %vm115, %v162, %v164
    %v167 = vsel %vm118, %v165, 0.0
    %168 = vadd.xlane.f32.xlu0 %v167
    %v169 = vpop.xlane.xlu0 %168
    %v170 = vrcp.pop %v169
    %v172 = vperm.slane %v170, 0
    %v173 = vperm.slane %v170, 1
    %v174 = vperm.slane %v170, 2
    %v175 = vperm.slane %v170, 3
    %v180 = vmul.f32 %v136, %v172
    %v181 = vmul.f32 %v138, %v173
    %v182 = vmul.f32 %v140, %v174
    %v183 = vmul.f32 %v142, %v175
    %188 = vset.pattern.permute.xlu0 0
    %189 = vperm.xlu0 %188, %v180
    %v190 = vpop.permute.xlu0 %189
    %191 = vset.pattern.permute.xlu0 0
    %192 = vperm.xlu0 %191, %v181
    %v193 = vpop.permute.xlu0 %192
    %194 = vset.pattern.permute.xlu0 0
    %195 = vperm.xlu0 %194, %v182
    %v196 = vpop.permute.xlu0 %195
    %197 = vset.pattern.permute.xlu0 0
    %198 = vperm.xlu0 %197, %v183
    %v199 = vpop.permute.xlu0 %198
    %v200 = vperm.slane %v190, %v106
    %v201 = vperm.slane %v193, %v106
    %v202 = vperm.slane %v196, %v106
    %v203 = vperm.slane %v199, %v106
    %v204 = vsel %vm111, %v201, %v200
    %v205 = vsel %vm113, %v202, %v204
    %v206 = vsel %vm115, %v203, %v205
    %208 = vst.msk [vmem:[#allocation7] sm:$0xf] %vm118, %v206
    // Predicated region
    $region18: #{tpu_custom_call.1} parent=1 // pred_check
      _
    $region19: #{tpu_custom_call.1} parent=1 // pred_check_branch
      %210 = sbr.rel (0) target = $region21
    $region20: #{tpu_custom_call.1} parent=1 // pred_region
      %212 = vsyncadd [#allocation4], 0
      %s214 = sshll.u32 [#allocation7], 4
      %s215 = int_to_ptr.vmem [resolvable:$true] %s214
      %s216 = sshll.u32 %s2, 4
      %s217 = int_to_ptr.hbm [resolvable:$true] %s216
      %219 = dma.vmem_to_hbm [thread:$0]  %s215, 64, %s217, [#allocation4]
    $region21: #{tpu_custom_call.1} parent=1 // pred_fallthru
      _
    // Predicated region
    $region22: #{tpu_custom_call.1} parent=1 // pred_check
      _
    $region23: #{tpu_custom_call.1} parent=1 // pred_check_branch
      %221 = sbr.rel (0) target = $region25
    $region24: #{tpu_custom_call.1} parent=1 // pred_region
      %223 = dma.done [#allocation4], 64
    $region25: #{tpu_custom_call.1} parent=1 // pred_fallthru
      _
    %224 = vsyncpa [#allocation3], 1
    %225 = vsyncpa [#allocation6], 1
    %226 = vsyncpa [#allocation4], 1

</llo_original>
